<compile_context>
chip_gen: v7x
topology: tpu7x:2x2x1
jax: 0.10.0
libtpu: 0.0.40
codegen_flags: <defaults>
</compile_context>

<pallas_src>
import functools

import jax
import jax.numpy as jnp
from jax import lax
from jax.experimental import pallas as pl
from jax.experimental.pallas import tpu as pltpu


def _round_up(n, m):
    return ((n + m - 1) // m) * m


def _mlp_kernel(x_ref, w1_ref, b1_ref, w2_ref, b2_ref,
                w3_ref, b3_ref, w4_ref, b4_ref, o_ref):
    # Natural-layout x tile (tb, D) f32 -> bf16 on the VPU (hidden under layer-1 MXU work).
    x = x_ref[...].astype(jnp.bfloat16)
    # Contract the "in" dim of both operands: A(m, k) @ W(n, k)^T with PyTorch (out, in)
    # weights; f32 MXU accumulation, fused bias + ReLU, bf16 recast for the next MXU pass.
    dn = (((1,), (1,)), ((), ()))
    h = lax.dot_general(x, w1_ref[...], dn, preferred_element_type=jnp.float32)    # (tb, 512)
    h = jnp.maximum(h + b1_ref[...], 0.0).astype(jnp.bfloat16)
    h = lax.dot_general(h, w2_ref[...], dn, preferred_element_type=jnp.float32)    # (tb, 128)
    h = jnp.maximum(h + b2_ref[...], 0.0).astype(jnp.bfloat16)
    h = lax.dot_general(h, w3_ref[...], dn, preferred_element_type=jnp.float32)    # (tb, 64)
    h = jnp.maximum(h + b3_ref[...], 0.0)                                          # f32 (tb, 64)
    # Layer 4 (64 -> 1): w4 (1, 64) as LHS so the tiny MXU matmul lands as a lane-dense
    # (1, tb) row (unmasked vector stores) instead of a masked (tb, 1) column.
    out = lax.dot_general(w4_ref[...], h, dn, preferred_element_type=jnp.float32)  # (1, tb)
    o_ref[...] = (out + b4_ref[...]).astype(o_ref.dtype)


def prepare_params(params):
    """One-time conversion of PyTorch-layout f32 params into kernel-ready operands.

    Call ONCE outside the per-call path (weights are constant in serving); re-casting
    inside the forward would re-read/re-write all weights from HBM on every call.
    """
    w1, b1, w2, b2, w3, b3, w4, b4 = params            # w: (out, in), b: (out,)
    return (
        w1.astype(jnp.bfloat16), b1.reshape(1, -1).astype(jnp.float32),
        w2.astype(jnp.bfloat16), b2.reshape(1, -1).astype(jnp.float32),
        w3.astype(jnp.bfloat16), b3.reshape(1, -1).astype(jnp.float32),
        w4.reshape(1, -1).astype(jnp.float32),          # (1, 64) kept f32 (tiny, final layer)
        b4.reshape(1, -1).astype(jnp.float32),          # (1, 1)
    )


@functools.partial(jax.jit, static_argnames=("block_b",))
def mlp_forward(x, prepared_params, block_b=1024):
    """Fused MLP forward. x: (B, D) f32 in natural layout; params from prepare_params().
    Returns (B, 1) f32."""
    w1, b1, w2, b2, w3, b3, w4, b4 = prepared_params
    B, D = x.shape
    h1, h2, h3 = w1.shape[0], w2.shape[0], w3.shape[0]

    # Large 128-lane-aligned batch tile; ensure >= 2 grid steps when possible so the
    # "parallel" batch axis shards across both v7x TensorCores.
    tb = min(block_b, _round_up(B, 128))
    if tb > 128 and (B + tb - 1) // tb == 1:
        tb = max(128, _round_up(tb // 2, 128))
    B_pad = _round_up(B, tb)
    grid = (B_pad // tb,)

    if B_pad != B:  # row-pad only (cheap); no transpose / dtype-cast pass on x.
        x = jnp.pad(x, ((0, B_pad - B), (0, 0)))

    def const_spec(a):
        # Whole-array block, constant index -> fetched once, resident across the grid.
        # Buffered(1): the block index never changes, so a 2nd pipeline buffer is wasted VMEM.
        try:
            return pl.BlockSpec(a.shape, lambda i: (0, 0), pipeline_mode=pl.Buffered(1))
        except (TypeError, AttributeError):  # older jax without pipeline_mode on BlockSpec
            return pl.BlockSpec(a.shape, lambda i: (0, 0))

    # VMEM residency estimate -> explicit scoped-VMEM limit (capped at 64 MiB: v7x-safe).
    weights_bytes = ((w1.size + w2.size + w3.size) * 2
                     + (w4.size + b1.size + b2.size + b3.size + b4.size) * 4)
    vmem_est = (2 * tb * D * 4              # x tile (f32), double-buffered
                + 2 * tb * 4                # (1, tb) output row, double-buffered
                + weights_bytes             # resident weights/biases (single-buffered)
                + (h1 + h2 + h3) * tb * 6)  # f32 + bf16 copies of the intermediates
    vmem_limit = int(min(max(vmem_est + (8 << 20), 32 << 20), 64 << 20))

    flops = 2 * B_pad * (D * h1 + h1 * h2 + h2 * h3 + h3 * 1)
    bytes_accessed = B_pad * D * 4 + weights_bytes + B_pad * 4

    # TODO(synk): for D >~ 8-16K on v7x (64 MiB VMEM), add a trailing "arbitrary" K-grid
    #             axis over D for layer 1 with a (tb, 512) f32 scratch accumulator, and
    #             optionally store W1 / the x tile as fp8 (fp8 is MXU-native on v7x).
    out = pl.pallas_call(
        _mlp_kernel,
        out_shape=jax.ShapeDtypeStruct((1, B_pad), jnp.float32),
        grid_spec=pltpu.PrefetchScalarGridSpec(
            num_scalar_prefetch=0,
            grid=grid,
            in_specs=[
                pl.BlockSpec((tb, D), lambda i: (i, 0)),   # natural-layout x tile
                const_spec(w1), const_spec(b1),
                const_spec(w2), const_spec(b2),
                const_spec(w3), const_spec(b3),
                const_spec(w4), const_spec(b4),
            ],
            out_specs=pl.BlockSpec((1, tb), lambda i: (0, i)),  # lane-dense output row
        ),
        compiler_params=pltpu.CompilerParams(
            dimension_semantics=("parallel",),
            vmem_limit_bytes=vmem_limit),
        cost_estimate=pl.CostEstimate(
            flops=flops, transcendentals=0, bytes_accessed=bytes_accessed),
    )(x, w1, b1, w2, b2, w3, b3, w4, b4)

    return out[0, :B][:, None]


def init_params(key, input_dim):
    """PyTorch nn.Linear default init: W, b ~ U[-1/sqrt(fan_in), +1/sqrt(fan_in)].
    Layout matches PyTorch: W is (out, in), b is (out,)."""
    dims = [(input_dim, 512), (512, 128), (128, 64), (64, 1)]
    params = []
    for fan_in, fan_out in dims:
        key, kw, kb = jax.random.split(key, 3)
        bound = 1.0 / float(fan_in) ** 0.5
        w = jax.random.uniform(kw, (fan_out, fan_in), jnp.float32, -bound, bound)
        b = jax.random.uniform(kb, (fan_out,), jnp.float32, -bound, bound)
        params += [w, b]
    return tuple(params)


def mlp_reference(x, params):
    """Pure-f32 JAX reference matching the PyTorch module semantics."""
    w1, b1, w2, b2, w3, b3, w4, b4 = params
    h = jnp.maximum(x @ w1.T + b1, 0.0)
    h = jnp.maximum(h @ w2.T + b2, 0.0)
    h = jnp.maximum(h @ w3.T + b3, 0.0)
    return h @ w4.T + b4


if __name__ == "__main__":
    key = jax.random.PRNGKey(0)
    k_x, k_p = jax.random.split(key)

    batch, input_dim = 8, 32
    x = jax.random.normal(k_x, (batch, input_dim), jnp.float32)
    params = init_params(k_p, input_dim)
    prepared = prepare_params(params)   # one-time weight prep, outside the per-call path

    out = jax.block_until_ready(mlp_forward(x, prepared))
    ref = mlp_reference(x, params)

    assert out.shape == (batch, 1), out.shape
    # bf16 matmul operands / f32 accumulation vs. pure-f32 reference -> modest tolerance.
    max_diff = float(jnp.max(jnp.abs(out - ref)))
    assert jnp.allclose(out, ref, atol=5e-2, rtol=5e-2), f"mismatch vs reference (max |diff|={max_diff})"

    print("KERNEL_OK")
</pallas_src>

<mosaic_0001>
module attributes {stable_mosaic.version = 11 : i64} {
  func.func @_mlp_kernel(%arg0: i32, %arg1: memref<128x32xf32, #tpu.memory_space<vmem>>, %arg2: memref<512x32xbf16, #tpu.memory_space<vmem>>, %arg3: memref<1x512xf32, #tpu.memory_space<vmem>>, %arg4: memref<128x512xbf16, #tpu.memory_space<vmem>>, %arg5: memref<1x128xf32, #tpu.memory_space<vmem>>, %arg6: memref<64x128xbf16, #tpu.memory_space<vmem>>, %arg7: memref<1x64xf32, #tpu.memory_space<vmem>>, %arg8: memref<1x64xf32, #tpu.memory_space<vmem>>, %arg9: memref<1x1xf32, #tpu.memory_space<vmem>>, %arg10: memref<1x128xf32, #tpu.memory_space<vmem>>) attributes {dimension_semantics = [#tpu.dimension_semantics<parallel>], iteration_bounds = array<i64: 1>, scalar_prefetch = 0 : i64, scratch_operands = 0 : i64, tpu.core_type = #tpu.core_type<tc>, window_params = [{transform_indices = @transform_0, window_bounds = array<i64: 128, 32>}, {pipeline_mode = #tpu.pipeline_mode<synchronous>, transform_indices = @transform_1, window_bounds = array<i64: 512, 32>}, {pipeline_mode = #tpu.pipeline_mode<synchronous>, transform_indices = @transform_2, window_bounds = array<i64: 1, 512>}, {pipeline_mode = #tpu.pipeline_mode<synchronous>, transform_indices = @transform_3, window_bounds = array<i64: 128, 512>}, {pipeline_mode = #tpu.pipeline_mode<synchronous>, transform_indices = @transform_4, window_bounds = array<i64: 1, 128>}, {pipeline_mode = #tpu.pipeline_mode<synchronous>, transform_indices = @transform_5, window_bounds = array<i64: 64, 128>}, {pipeline_mode = #tpu.pipeline_mode<synchronous>, transform_indices = @transform_6, window_bounds = array<i64: 1, 64>}, {pipeline_mode = #tpu.pipeline_mode<synchronous>, transform_indices = @transform_7, window_bounds = array<i64: 1, 64>}, {pipeline_mode = #tpu.pipeline_mode<synchronous>, transform_indices = @transform_8, window_bounds = array<i64: 1, 1>}, {transform_indices = @transform_9, window_bounds = array<i64: 1, 128>}]} {
    %c0 = arith.constant 0 : index
    %c0_0 = arith.constant 0 : index
    %0 = vector.load %arg1[%c0, %c0_0] : memref<128x32xf32, #tpu.memory_space<vmem>>, vector<128x32xf32>
    %1 = arith.truncf %0 : vector<128x32xf32> to vector<128x32xbf16>
    %c0_1 = arith.constant 0 : index
    %c0_2 = arith.constant 0 : index
    %2 = vector.load %arg2[%c0_1, %c0_2] : memref<512x32xbf16, #tpu.memory_space<vmem>>, vector<512x32xbf16>
    %cst = arith.constant dense<0.000000e+00> : vector<128x512xf32>
    %3 = tpu.matmul %1, %2, %cst {dimension_numbers = #tpu.dot_dimension_numbers<[1], [1], [0], [0], [0, 0, 1, 0], [], []>} : vector<128x32xbf16>, vector<512x32xbf16>, vector<128x512xf32> -> vector<128x512xf32>
    %c0_3 = arith.constant 0 : index
    %c0_4 = arith.constant 0 : index
    %4 = vector.load %arg3[%c0_3, %c0_4] : memref<1x512xf32, #tpu.memory_space<vmem>>, vector<1x512xf32>
    %5 = vector.broadcast %4 : vector<1x512xf32> to vector<128x512xf32>
    %6 = arith.addf %3, %5 : vector<128x512xf32>
    %cst_5 = arith.constant 0.000000e+00 : f32
    %7 = vector.broadcast %cst_5 : f32 to vector<128x512xf32>
    %8 = arith.maximumf %6, %7 : vector<128x512xf32>
    %9 = arith.truncf %8 : vector<128x512xf32> to vector<128x512xbf16>
    %c0_6 = arith.constant 0 : index
    %c0_7 = arith.constant 0 : index
    %10 = vector.load %arg4[%c0_6, %c0_7] : memref<128x512xbf16, #tpu.memory_space<vmem>>, vector<128x512xbf16>
    %cst_8 = arith.constant dense<0.000000e+00> : vector<128x128xf32>
    %11 = tpu.matmul %9, %10, %cst_8 {dimension_numbers = #tpu.dot_dimension_numbers<[1], [1], [0], [0], [0, 0, 1, 0], [], []>} : vector<128x512xbf16>, vector<128x512xbf16>, vector<128x128xf32> -> vector<128x128xf32>
    %c0_9 = arith.constant 0 : index
    %c0_10 = arith.constant 0 : index
    %12 = vector.load %arg5[%c0_9, %c0_10] : memref<1x128xf32, #tpu.memory_space<vmem>>, vector<1x128xf32>
    %13 = vector.broadcast %12 : vector<1x128xf32> to vector<128x128xf32>
    %14 = arith.addf %11, %13 : vector<128x128xf32>
    %cst_11 = arith.constant 0.000000e+00 : f32
    %15 = vector.broadcast %cst_11 : f32 to vector<128x128xf32>
    %16 = arith.maximumf %14, %15 : vector<128x128xf32>
    %17 = arith.truncf %16 : vector<128x128xf32> to vector<128x128xbf16>
    %c0_12 = arith.constant 0 : index
    %c0_13 = arith.constant 0 : index
    %18 = vector.load %arg6[%c0_12, %c0_13] : memref<64x128xbf16, #tpu.memory_space<vmem>>, vector<64x128xbf16>
    %cst_14 = arith.constant dense<0.000000e+00> : vector<128x64xf32>
    %19 = tpu.matmul %17, %18, %cst_14 {dimension_numbers = #tpu.dot_dimension_numbers<[1], [1], [0], [0], [0, 0, 1, 0], [], []>} : vector<128x128xbf16>, vector<64x128xbf16>, vector<128x64xf32> -> vector<128x64xf32>
    %c0_15 = arith.constant 0 : index
    %c0_16 = arith.constant 0 : index
    %20 = vector.load %arg7[%c0_15, %c0_16] : memref<1x64xf32, #tpu.memory_space<vmem>>, vector<1x64xf32>
    %21 = vector.broadcast %20 : vector<1x64xf32> to vector<128x64xf32>
    %22 = arith.addf %19, %21 : vector<128x64xf32>
    %cst_17 = arith.constant 0.000000e+00 : f32
    %23 = vector.broadcast %cst_17 : f32 to vector<128x64xf32>
    %24 = arith.maximumf %22, %23 : vector<128x64xf32>
    %c0_18 = arith.constant 0 : index
    %c0_19 = arith.constant 0 : index
    %25 = vector.load %arg8[%c0_18, %c0_19] : memref<1x64xf32, #tpu.memory_space<vmem>>, vector<1x64xf32>
    %cst_20 = arith.constant dense<0.000000e+00> : vector<1x128xf32>
    %26 = tpu.matmul %25, %24, %cst_20 {dimension_numbers = #tpu.dot_dimension_numbers<[1], [1], [0], [0], [0, 0, 1, 0], [], []>} : vector<1x64xf32>, vector<128x64xf32>, vector<1x128xf32> -> vector<1x128xf32>
    %c0_21 = arith.constant 0 : index
    %c0_22 = arith.constant 0 : index
    %27 = vector.load %arg9[%c0_21, %c0_22] : memref<1x1xf32, #tpu.memory_space<vmem>>, vector<1x1xf32>
    %28 = vector.broadcast %27 : vector<1x1xf32> to vector<1x128xf32>
    %29 = arith.addf %26, %28 : vector<1x128xf32>
    %c0_23 = arith.constant 0 : index
    %c0_24 = arith.constant 0 : index
    %30 = vector.load %arg10[%c0_23, %c0_24] : memref<1x128xf32, #tpu.memory_space<vmem>>, vector<1x128xf32>
    tpu.vector_store %arg10[%c0_23, %c0_24], %29 {strides = array<i32>} : memref<1x128xf32, #tpu.memory_space<vmem>>, vector<1x128xf32>,
    return
  }
  func.func @transform_0(%arg0: i32) -> (i32, i32) {
    %c0_i32 = arith.constant 0 : i32
    %c0_i32_0 = arith.constant 0 : i32
    return %arg0, %c0_i32 : i32, i32
  }
  func.func @transform_1(%arg0: i32) -> (i32, i32) {
    %c0_i32 = arith.constant 0 : i32
    %c0_i32_0 = arith.constant 0 : i32
    %c0_i32_1 = arith.constant 0 : i32
    return %c0_i32, %c0_i32_0 : i32, i32
  }
  func.func @transform_2(%arg0: i32) -> (i32, i32) {
    %c0_i32 = arith.constant 0 : i32
    %c0_i32_0 = arith.constant 0 : i32
    %c0_i32_1 = arith.constant 0 : i32
    return %c0_i32, %c0_i32_0 : i32, i32
  }
  func.func @transform_3(%arg0: i32) -> (i32, i32) {
    %c0_i32 = arith.constant 0 : i32
    %c0_i32_0 = arith.constant 0 : i32
    %c0_i32_1 = arith.constant 0 : i32
    return %c0_i32, %c0_i32_0 : i32, i32
  }
  func.func @transform_4(%arg0: i32) -> (i32, i32) {
    %c0_i32 = arith.constant 0 : i32
    %c0_i32_0 = arith.constant 0 : i32
    %c0_i32_1 = arith.constant 0 : i32
    return %c0_i32, %c0_i32_0 : i32, i32
  }
  func.func @transform_5(%arg0: i32) -> (i32, i32) {
    %c0_i32 = arith.constant 0 : i32
    %c0_i32_0 = arith.constant 0 : i32
    %c0_i32_1 = arith.constant 0 : i32
    return %c0_i32, %c0_i32_0 : i32, i32
  }
  func.func @transform_6(%arg0: i32) -> (i32, i32) {
    %c0_i32 = arith.constant 0 : i32
    %c0_i32_0 = arith.constant 0 : i32
    %c0_i32_1 = arith.constant 0 : i32
    return %c0_i32, %c0_i32_0 : i32, i32
  }
  func.func @transform_7(%arg0: i32) -> (i32, i32) {
    %c0_i32 = arith.constant 0 : i32
    %c0_i32_0 = arith.constant 0 : i32
    %c0_i32_1 = arith.constant 0 : i32
    return %c0_i32, %c0_i32_0 : i32, i32
  }
  func.func @transform_8(%arg0: i32) -> (i32, i32) {
    %c0_i32 = arith.constant 0 : i32
    %c0_i32_0 = arith.constant 0 : i32
    %c0_i32_1 = arith.constant 0 : i32
    return %c0_i32, %c0_i32_0 : i32, i32
  }
  func.func @transform_9(%arg0: i32) -> (i32, i32) {
    %c0_i32 = arith.constant 0 : i32
    %c0_i32_0 = arith.constant 0 : i32
    return %c0_i32, %arg0 : i32, i32
  }
}

</mosaic_0001>

<llo_original>
// kernel: mlp_forward.1
$region0: #{mlp_forward.1}
  #allocation0 [shape = 'u32[]', space=smem, size = 0x4, offset = 0x4, fixed_abs, tag = 'smem constant byte address 0x4 - core index']
  #allocation1 [shape = 'u32[144,128]{1,0:T(1,128)}', space=vmem, size = 0x12000, scoped, tag = 'internal scratch']
  #allocation2 [shape = 'f32[1,1]{1,0:T(1,128)S(1)}', space=vmem, size = 0x200, scoped, tag = 'scoped memory for mlp_forward.1']
  %s0 = inlined_call_operand.vmem [shape: f32[128,32], index: 0, kind: input, shape index: {}]
  %s1 = inlined_call_operand.vmem [shape: bf16[512,32], index: 1, kind: input, shape index: {}]
  %s2 = inlined_call_operand.vmem [shape: f32[1,512], index: 2, kind: input, shape index: {}]
  %s3 = inlined_call_operand.vmem [shape: bf16[128,512], index: 3, kind: input, shape index: {}]
  %s4 = inlined_call_operand.vmem [shape: f32[1,128], index: 4, kind: input, shape index: {}]
  %s5 = inlined_call_operand.vmem [shape: bf16[64,128], index: 5, kind: input, shape index: {}]
  %s6 = inlined_call_operand.vmem [shape: f32[1,64], index: 6, kind: input, shape index: {}]
  %s7 = inlined_call_operand.vmem [shape: f32[1,64], index: 7, kind: input, shape index: {}]
  %s8 = inlined_call_operand.<no memory space> [shape: f32[1,1], index: 8, kind: input, shape index: {}]
  %s9 = inlined_call_operand.vmem [shape: f32[1,128], index: 9, kind: output, shape index: {}]
  %s10 = sld [smem:[#allocation0]]
  $region46: #{mlp_forward.1} parent=0
    _
  %s12 = ssub.s32 1, %s10
  %s13 = scalar_select 0, %s12, %s10
  %v14 = vstv %s8
  %15 = vst [vmem:[#allocation2] sm:$0x1] %v14
  // Predicated region
  $region2: #{mlp_forward.1} parent=0 // pred_check
    _
  $region3: #{mlp_forward.1} parent=0 // pred_check_branch
    %17 = sbr.rel (0) target = $region5
  $region4: #{mlp_forward.1} parent=0 // pred_region
    _
  $region5: #{mlp_forward.1} parent=0 // pred_fallthru
    _
  // Predicated region
  $region6: #{mlp_forward.1} parent=0 // pred_check
    _
  $region7: #{mlp_forward.1} parent=0 // pred_check_branch
    %19 = sbr.rel (0) target = $region9
  $region8: #{mlp_forward.1} parent=0 // pred_region
    _
  $region9: #{mlp_forward.1} parent=0 // pred_fallthru
    _
  // Predicated region
  $region10: #{mlp_forward.1} parent=0 // pred_check
    _
  $region11: #{mlp_forward.1} parent=0 // pred_check_branch
    %21 = sbr.rel (0) target = $region13
  $region12: #{mlp_forward.1} parent=0 // pred_region
    _
  $region13: #{mlp_forward.1} parent=0 // pred_fallthru
    _
  // Predicated region
  $region14: #{mlp_forward.1} parent=0 // pred_check
    _
  $region15: #{mlp_forward.1} parent=0 // pred_check_branch
    %23 = sbr.rel (0) target = $region17
  $region16: #{mlp_forward.1} parent=0 // pred_region
    _
  $region17: #{mlp_forward.1} parent=0 // pred_fallthru
    _
  // Predicated region
  $region18: #{mlp_forward.1} parent=0 // pred_check
    _
  $region19: #{mlp_forward.1} parent=0 // pred_check_branch
    %25 = sbr.rel (0) target = $region21
  $region20: #{mlp_forward.1} parent=0 // pred_region
    _
  $region21: #{mlp_forward.1} parent=0 // pred_fallthru
    _
  // Predicated region
  $region22: #{mlp_forward.1} parent=0 // pred_check
    _
  $region23: #{mlp_forward.1} parent=0 // pred_check_branch
    %27 = sbr.rel (0) target = $region25
  $region24: #{mlp_forward.1} parent=0 // pred_region
    _
  $region25: #{mlp_forward.1} parent=0 // pred_fallthru
    _
  // Predicated region
  $region26: #{mlp_forward.1} parent=0 // pred_check
    _
  $region27: #{mlp_forward.1} parent=0 // pred_check_branch
    %29 = sbr.rel (0) target = $region29
  $region28: #{mlp_forward.1} parent=0 // pred_region
    _
  $region29: #{mlp_forward.1} parent=0 // pred_fallthru
    _
  // Predicated region
  $region30: #{mlp_forward.1} parent=0 // pred_check
    _
  $region31: #{mlp_forward.1} parent=0 // pred_check_branch
    %31 = sbr.rel (0) target = $region33
  $region32: #{mlp_forward.1} parent=0 // pred_region
    _
  $region33: #{mlp_forward.1} parent=0 // pred_fallthru
    _
  // Predicated region
  $region34: #{mlp_forward.1} parent=0 // pred_check
    _
  $region35: #{mlp_forward.1} parent=0 // pred_check_branch
    %33 = sbr.rel (0) target = $region37
  $region36: #{mlp_forward.1} parent=0 // pred_region
    _
  $region37: #{mlp_forward.1} parent=0 // pred_fallthru
    _
  %v35 = vld [vmem:[%s0] sm:$0xff]
  %v36 = vld [vmem:[%s0 + $0x8] sm:$0xff]
  %v37 = vld [vmem:[%s0 + $0x10] sm:$0xff]
  %v38 = vld [vmem:[%s0 + $0x18] sm:$0xff]
  %v39 = vld [vmem:[%s0 + $0x20] sm:$0xff]
  %v40 = vld [vmem:[%s0 + $0x28] sm:$0xff]
  %v41 = vld [vmem:[%s0 + $0x30] sm:$0xff]
  %v42 = vld [vmem:[%s0 + $0x38] sm:$0xff]
  %v43 = vld [vmem:[%s0 + $0x40] sm:$0xff]
  %v44 = vld [vmem:[%s0 + $0x48] sm:$0xff]
  %v45 = vld [vmem:[%s0 + $0x50] sm:$0xff]
  %v46 = vld [vmem:[%s0 + $0x58] sm:$0xff]
  %v47 = vld [vmem:[%s0 + $0x60] sm:$0xff]
  %v48 = vld [vmem:[%s0 + $0x68] sm:$0xff]
  %v49 = vld [vmem:[%s0 + $0x70] sm:$0xff]
  %v50 = vld [vmem:[%s0 + $0x78] sm:$0xff]
  %v51 = vpack.c.bf16 %v36, %v35
  %v52 = vpack.c.bf16 %v38, %v37
  %v53 = vpack.c.bf16 %v40, %v39
  %v54 = vpack.c.bf16 %v42, %v41
  %v55 = vpack.c.bf16 %v44, %v43
  %v56 = vpack.c.bf16 %v46, %v45
  %v57 = vpack.c.bf16 %v48, %v47
  %v58 = vpack.c.bf16 %v50, %v49
  %v59 = vld [vmem:[%s1] sm:$0xf]
  %v60 = vld [vmem:[%s1 + $0x4] sm:$0xf]
  %v61 = vld [vmem:[%s1 + $0x8] sm:$0xf]
  %v62 = vld [vmem:[%s1 + $0xc] sm:$0xf]
  %v63 = vld [vmem:[%s1 + $0x10] sm:$0xf]
  %v64 = vld [vmem:[%s1 + $0x14] sm:$0xf]
  %v65 = vld [vmem:[%s1 + $0x18] sm:$0xf]
  %v66 = vld [vmem:[%s1 + $0x1c] sm:$0xf]
  %v67 = vld [vmem:[%s1 + $0x20] sm:$0xf]
  %v68 = vld [vmem:[%s1 + $0x24] sm:$0xf]
  %v69 = vld [vmem:[%s1 + $0x28] sm:$0xf]
  %v70 = vld [vmem:[%s1 + $0x2c] sm:$0xf]
  %v71 = vld [vmem:[%s1 + $0x30] sm:$0xf]
  %v72 = vld [vmem:[%s1 + $0x34] sm:$0xf]
  %v73 = vld [vmem:[%s1 + $0x38] sm:$0xf]
  %v74 = vld [vmem:[%s1 + $0x3c] sm:$0xf]
  %v75 = vld [vmem:[%s1 + $0x40] sm:$0xf]
  %v76 = vld [vmem:[%s1 + $0x44] sm:$0xf]
  %v77 = vld [vmem:[%s1 + $0x48] sm:$0xf]
  %v78 = vld [vmem:[%s1 + $0x4c] sm:$0xf]
  %v79 = vld [vmem:[%s1 + $0x50] sm:$0xf]
  %v80 = vld [vmem:[%s1 + $0x54] sm:$0xf]
  %v81 = vld [vmem:[%s1 + $0x58] sm:$0xf]
  %v82 = vld [vmem:[%s1 + $0x5c] sm:$0xf]
  %v83 = vld [vmem:[%s1 + $0x60] sm:$0xf]
  %v84 = vld [vmem:[%s1 + $0x64] sm:$0xf]
  %v85 = vld [vmem:[%s1 + $0x68] sm:$0xf]
  %v86 = vld [vmem:[%s1 + $0x6c] sm:$0xf]
  %v87 = vld [vmem:[%s1 + $0x70] sm:$0xf]
  %v88 = vld [vmem:[%s1 + $0x74] sm:$0xf]
  %v89 = vld [vmem:[%s1 + $0x78] sm:$0xf]
  %v90 = vld [vmem:[%s1 + $0x7c] sm:$0xf]
  %v91 = vld [vmem:[%s1 + $0x80] sm:$0xf]
  %v92 = vld [vmem:[%s1 + $0x84] sm:$0xf]
  %v93 = vld [vmem:[%s1 + $0x88] sm:$0xf]
  %v94 = vld [vmem:[%s1 + $0x8c] sm:$0xf]
  %v95 = vld [vmem:[%s1 + $0x90] sm:$0xf]
  %v96 = vld [vmem:[%s1 + $0x94] sm:$0xf]
  %v97 = vld [vmem:[%s1 + $0x98] sm:$0xf]
  %v98 = vld [vmem:[%s1 + $0x9c] sm:$0xf]
  %v99 = vld [vmem:[%s1 + $0xa0] sm:$0xf]
  %v100 = vld [vmem:[%s1 + $0xa4] sm:$0xf]
  %v101 = vld [vmem:[%s1 + $0xa8] sm:$0xf]
  %v102 = vld [vmem:[%s1 + $0xac] sm:$0xf]
  %v103 = vld [vmem:[%s1 + $0xb0] sm:$0xf]
  %v104 = vld [vmem:[%s1 + $0xb4] sm:$0xf]
  %v105 = vld [vmem:[%s1 + $0xb8] sm:$0xf]
  %v106 = vld [vmem:[%s1 + $0xbc] sm:$0xf]
  %v107 = vld [vmem:[%s1 + $0xc0] sm:$0xf]
  %v108 = vld [vmem:[%s1 + $0xc4] sm:$0xf]
  %v109 = vld [vmem:[%s1 + $0xc8] sm:$0xf]
  %v110 = vld [vmem:[%s1 + $0xcc] sm:$0xf]
  %v111 = vld [vmem:[%s1 + $0xd0] sm:$0xf]
  %v112 = vld [vmem:[%s1 + $0xd4] sm:$0xf]
  %v113 = vld [vmem:[%s1 + $0xd8] sm:$0xf]
  %v114 = vld [vmem:[%s1 + $0xdc] sm:$0xf]
  %v115 = vld [vmem:[%s1 + $0xe0] sm:$0xf]
  %v116 = vld [vmem:[%s1 + $0xe4] sm:$0xf]
  %v117 = vld [vmem:[%s1 + $0xe8] sm:$0xf]
  %v118 = vld [vmem:[%s1 + $0xec] sm:$0xf]
  %v119 = vld [vmem:[%s1 + $0xf0] sm:$0xf]
  %v120 = vld [vmem:[%s1 + $0xf4] sm:$0xf]
  %v121 = vld [vmem:[%s1 + $0xf8] sm:$0xf]
  %v122 = vld [vmem:[%s1 + $0xfc] sm:$0xf]
  %v123 = vld [vmem:[%s2] sm:$0xf]
  %v125 = vlaneseq
  %v126 = vshrl.u32 %v125, 7
  %v127 = vsub.s32 0, %v126
  %v128 = vrot.slane %v123, %v127
  %v129 = vlaneseq
  %v130 = vshrl.u32 %v129, 7
  %v131 = vsub.s32 1, %v130
  %v132 = vrot.slane %v123, %v131
  %v133 = vlaneseq
  %v134 = vshrl.u32 %v133, 7
  %v135 = vsub.s32 2, %v134
  %v136 = vrot.slane %v123, %v135
  %v137 = vlaneseq
  %v138 = vshrl.u32 %v137, 7
  %v139 = vsub.s32 3, %v138
  %v140 = vrot.slane %v123, %v139
  %v209 = vunpack.c.l.b16 %v59
  %v210 = vunpack.c.l.b16 %v60
  %v211 = vunpack.c.l.b16 %v61
  %v212 = vunpack.c.l.b16 %v62
  %v213 = vunpack.c.l.b16 %v63
  %v214 = vunpack.c.l.b16 %v64
  %v215 = vunpack.c.l.b16 %v65
  %v216 = vunpack.c.l.b16 %v66
  %v217 = vunpack.c.l.b16 %v67
  %v218 = vunpack.c.l.b16 %v68
  %v219 = vunpack.c.l.b16 %v69
  %v220 = vunpack.c.l.b16 %v70
  %v221 = vunpack.c.l.b16 %v71
  %v222 = vunpack.c.l.b16 %v72
  %v223 = vunpack.c.l.b16 %v73
  %v224 = vunpack.c.l.b16 %v74
  %v225 = vunpack.c.l.b16 %v75
  %v226 = vunpack.c.l.b16 %v76
  %v227 = vunpack.c.l.b16 %v77
  %v228 = vunpack.c.l.b16 %v78
  %v229 = vunpack.c.l.b16 %v79
  %v230 = vunpack.c.l.b16 %v80
  %v231 = vunpack.c.l.b16 %v81
  %v232 = vunpack.c.l.b16 %v82
  %v233 = vunpack.c.l.b16 %v83
  %v234 = vunpack.c.l.b16 %v84
  %v235 = vunpack.c.l.b16 %v85
  %v236 = vunpack.c.l.b16 %v86
  %v237 = vunpack.c.l.b16 %v87
  %v238 = vunpack.c.l.b16 %v88
  %v239 = vunpack.c.l.b16 %v89
  %v240 = vunpack.c.l.b16 %v90
  %v241 = vunpack.c.l.b16 %v91
  %v242 = vunpack.c.l.b16 %v92
  %v243 = vunpack.c.l.b16 %v93
  %v244 = vunpack.c.l.b16 %v94
  %v245 = vunpack.c.l.b16 %v95
  %v246 = vunpack.c.l.b16 %v96
  %v247 = vunpack.c.l.b16 %v97
  %v248 = vunpack.c.l.b16 %v98
  %v249 = vunpack.c.l.b16 %v99
  %v250 = vunpack.c.l.b16 %v100
  %v251 = vunpack.c.l.b16 %v101
  %v252 = vunpack.c.l.b16 %v102
  %v253 = vunpack.c.l.b16 %v103
  %v254 = vunpack.c.l.b16 %v104
  %v255 = vunpack.c.l.b16 %v105
  %v256 = vunpack.c.l.b16 %v106
  %v257 = vunpack.c.l.b16 %v107
  %v258 = vunpack.c.l.b16 %v108
  %v259 = vunpack.c.l.b16 %v109
  %v260 = vunpack.c.l.b16 %v110
  %v261 = vunpack.c.l.b16 %v111
  %v262 = vunpack.c.l.b16 %v112
  %v263 = vunpack.c.l.b16 %v113
  %v264 = vunpack.c.l.b16 %v114
  %v265 = vunpack.c.l.b16 %v115
  %v266 = vunpack.c.l.b16 %v116
  %v267 = vunpack.c.l.b16 %v117
  %v268 = vunpack.c.l.b16 %v118
  %v269 = vunpack.c.l.b16 %v119
  %v270 = vunpack.c.l.b16 %v120
  %v271 = vunpack.c.l.b16 %v121
  %v272 = vunpack.c.l.b16 %v122
  %v273 = vpack.c.b16 %v210, %v209
  %v274 = vpack.c.b16 %v212, %v211
  %v275 = vpack.c.b16 %v214, %v213
  %v276 = vpack.c.b16 %v216, %v215
  %v277 = vpack.c.b16 %v218, %v217
  %v278 = vpack.c.b16 %v220, %v219
  %v279 = vpack.c.b16 %v222, %v221
  %v280 = vpack.c.b16 %v224, %v223
  %v281 = vpack.c.b16 %v226, %v225
  %v282 = vpack.c.b16 %v228, %v227
  %v283 = vpack.c.b16 %v230, %v229
  %v284 = vpack.c.b16 %v232, %v231
  %v285 = vpack.c.b16 %v234, %v233
  %v286 = vpack.c.b16 %v236, %v235
  %v287 = vpack.c.b16 %v238, %v237
  %v288 = vpack.c.b16 %v240, %v239
  %v289 = vpack.c.b16 %v242, %v241
  %v290 = vpack.c.b16 %v244, %v243
  %v291 = vpack.c.b16 %v246, %v245
  %v292 = vpack.c.b16 %v248, %v247
  %v293 = vpack.c.b16 %v250, %v249
  %v294 = vpack.c.b16 %v252, %v251
  %v295 = vpack.c.b16 %v254, %v253
  %v296 = vpack.c.b16 %v256, %v255
  %v297 = vpack.c.b16 %v258, %v257
  %v298 = vpack.c.b16 %v260, %v259
  %v299 = vpack.c.b16 %v262, %v261
  %v300 = vpack.c.b16 %v264, %v263
  %v301 = vpack.c.b16 %v266, %v265
  %v302 = vpack.c.b16 %v268, %v267
  %v303 = vpack.c.b16 %v270, %v269
  %v304 = vpack.c.b16 %v272, %v271
  %vm305 = vcmask 261120
  %v307 = vsel %vm305, %v51, 0
  %v310 = vsel %vm305, %v52, 0
  %v313 = vsel %vm305, %v53, 0
  %v316 = vsel %vm305, %v54, 0
  %v319 = vsel %vm305, %v55, 0
  %v322 = vsel %vm305, %v56, 0
  %v325 = vsel %vm305, %v57, 0
  %v328 = vsel %vm305, %v58, 0
  %v331 = vsel %vm305, %v273, 0
  %v334 = vsel %vm305, %v274, 0
  %v337 = vsel %vm305, %v275, 0
  %v340 = vsel %vm305, %v276, 0
  %v343 = vsel %vm305, %v277, 0
  %v346 = vsel %vm305, %v278, 0
  %v349 = vsel %vm305, %v279, 0
  %v352 = vsel %vm305, %v280, 0
  %v355 = vsel %vm305, %v281, 0
  %v358 = vsel %vm305, %v282, 0
  %v361 = vsel %vm305, %v283, 0
  %v364 = vsel %vm305, %v284, 0
  %v367 = vsel %vm305, %v285, 0
  %v370 = vsel %vm305, %v286, 0
  %v373 = vsel %vm305, %v287, 0
  %v376 = vsel %vm305, %v288, 0
  %v379 = vsel %vm305, %v289, 0
  %v382 = vsel %vm305, %v290, 0
  %v385 = vsel %vm305, %v291, 0
  %v388 = vsel %vm305, %v292, 0
  %v391 = vsel %vm305, %v293, 0
  %v394 = vsel %vm305, %v294, 0
  %v397 = vsel %vm305, %v295, 0
  %v400 = vsel %vm305, %v296, 0
  %v403 = vsel %vm305, %v297, 0
  %v406 = vsel %vm305, %v298, 0
  %v409 = vsel %vm305, %v299, 0
  %v412 = vsel %vm305, %v300, 0
  %v415 = vsel %vm305, %v301, 0
  %v418 = vsel %vm305, %v302, 0
  %v421 = vsel %vm305, %v303, 0
  %v424 = vsel %vm305, %v304, 0
  %426 = vmatprep.subr.bf16.mxu0 0
  %427 = vmatpush1.bf16.xpose.msra.mxu0 %v331
  %428 = vmatprep.subr.bf16.mxu0 0
  %429 = vmatpush1.bf16.xpose.msra.mxu0 %v334
  %430 = vmatprep.subr.bf16.mxu0 0
  %431 = vmatpush1.bf16.xpose.msra.mxu0 %v337
  %432 = vmatprep.subr.bf16.mxu0 0
  %433 = vmatpush1.bf16.xpose.msra.mxu0 %v340
  %434 = vmatprep.subr.bf16.mxu0 0
  %435 = vmatpush1.bf16.xpose.msra.mxu0 %v343
  %436 = vmatprep.subr.bf16.mxu0 0
  %437 = vmatpush1.bf16.xpose.msra.mxu0 %v346
  %438 = vmatprep.subr.bf16.mxu0 0
  %439 = vmatpush1.bf16.xpose.msra.mxu0 %v349
  %440 = vmatprep.subr.bf16.mxu0 0
  %441 = vmatpush1.bf16.xpose.msra.mxu0 %v352
  %442 = vmatprep.subr.bf16.mxu0 0
  %443 = vmatpush1.bf16.xpose.msra.mxu0 %v355
  %444 = vmatprep.subr.bf16.mxu0 0
  %445 = vmatpush1.bf16.xpose.msra.mxu0 %v358
  %446 = vmatprep.subr.bf16.mxu0 0
  %447 = vmatpush1.bf16.xpose.msra.mxu0 %v361
  %448 = vmatprep.subr.bf16.mxu0 0
  %449 = vmatpush1.bf16.xpose.msra.mxu0 %v364
  %450 = vmatprep.subr.bf16.mxu0 0
  %451 = vmatpush1.bf16.xpose.msra.mxu0 %v367
  %452 = vmatprep.subr.bf16.mxu0 0
  %453 = vmatpush1.bf16.xpose.msra.mxu0 %v370
  %454 = vmatprep.subr.bf16.mxu0 0
  %455 = vmatpush1.bf16.xpose.msra.mxu0 %v373
  %456 = vmatprep.subr.bf16.mxu0 0
  %457 = vmatpush1.bf16.xpose.msra.mxu0 %v376
  %458 = vmatprep.mubr.bf16.mxu0 0
  %459 = vmatmul.mubr.bf16.gmra.mrb[0].mxu0 %v307
  %v460 = vpop.f32.mrb[0].mxu0
  %v461 = vadd.f32 %v128, %v460
  %v462 = vpop.f32.mrb[0].mxu0
  %v463 = vadd.f32 %v132, %v462
  %v464 = vpop.f32.mrb[0].mxu0
  %v465 = vadd.f32 %v128, %v464
  %v466 = vpop.f32.mrb[0].mxu0
  %v467 = vadd.f32 %v132, %v466
  %468 = vmatprep.mubr.bf16.mxu0 0
  %469 = vmatmul.mubr.bf16.gmra.mrb[0].mxu0 %v310
  %v470 = vpop.f32.mrb[0].mxu0
  %v471 = vadd.f32 %v128, %v470
  %v472 = vpop.f32.mrb[0].mxu0
  %v473 = vadd.f32 %v132, %v472
  %v474 = vpop.f32.mrb[0].mxu0
  %v475 = vadd.f32 %v128, %v474
  %v476 = vpop.f32.mrb[0].mxu0
  %v477 = vadd.f32 %v132, %v476
  %478 = vmatprep.mubr.bf16.mxu0 0
  %479 = vmatmul.mubr.bf16.gmra.mrb[0].mxu0 %v313
  %v480 = vpop.f32.mrb[0].mxu0
  %v481 = vadd.f32 %v128, %v480
  %v482 = vpop.f32.mrb[0].mxu0
  %v483 = vadd.f32 %v132, %v482
  %v484 = vpop.f32.mrb[0].mxu0
  %v485 = vadd.f32 %v128, %v484
  %v486 = vpop.f32.mrb[0].mxu0
  %v487 = vadd.f32 %v132, %v486
  %488 = vmatprep.mubr.bf16.mxu0 0
  %489 = vmatmul.mubr.bf16.gmra.mrb[0].mxu0 %v316
  %v490 = vpop.f32.mrb[0].mxu0
  %v491 = vadd.f32 %v128, %v490
  %v492 = vpop.f32.mrb[0].mxu0
  %v493 = vadd.f32 %v132, %v492
  %v494 = vpop.f32.mrb[0].mxu0
  %v495 = vadd.f32 %v128, %v494
  %v496 = vpop.f32.mrb[0].mxu0
  %v497 = vadd.f32 %v132, %v496
  %498 = vmatprep.mubr.bf16.mxu0 0
  %499 = vmatmul.mubr.bf16.gmra.mrb[0].mxu0 %v319
  %v500 = vpop.f32.mrb[0].mxu0
  %v501 = vadd.f32 %v128, %v500
  %v502 = vpop.f32.mrb[0].mxu0
  %v503 = vadd.f32 %v132, %v502
  %v504 = vpop.f32.mrb[0].mxu0
  %v505 = vadd.f32 %v128, %v504
  %v506 = vpop.f32.mrb[0].mxu0
  %v507 = vadd.f32 %v132, %v506
  %508 = vmatprep.mubr.bf16.mxu0 0
  %509 = vmatmul.mubr.bf16.gmra.mrb[0].mxu0 %v322
  %v510 = vpop.f32.mrb[0].mxu0
  %v511 = vadd.f32 %v128, %v510
  %v512 = vpop.f32.mrb[0].mxu0
  %v513 = vadd.f32 %v132, %v512
  %v514 = vpop.f32.mrb[0].mxu0
  %v515 = vadd.f32 %v128, %v514
  %v516 = vpop.f32.mrb[0].mxu0
  %v517 = vadd.f32 %v132, %v516
  %518 = vmatprep.mubr.bf16.mxu0 0
  %519 = vmatmul.mubr.bf16.gmra.mrb[0].mxu0 %v325
  %v520 = vpop.f32.mrb[0].mxu0
  %v521 = vadd.f32 %v128, %v520
  %v522 = vpop.f32.mrb[0].mxu0
  %v523 = vadd.f32 %v132, %v522
  %v524 = vpop.f32.mrb[0].mxu0
  %v525 = vadd.f32 %v128, %v524
  %v526 = vpop.f32.mrb[0].mxu0
  %v527 = vadd.f32 %v132, %v526
  %528 = vmatprep.mubr.bf16.mxu0 0
  %529 = vmatmul.mubr.bf16.gmra.mrb[0].mxu0 %v328
  %v530 = vpop.f32.mrb[0].mxu0
  %v531 = vadd.f32 %v128, %v530
  %v532 = vpop.f32.mrb[0].mxu0
  %v533 = vadd.f32 %v132, %v532
  %v534 = vpop.f32.mrb[0].mxu0
  %v535 = vadd.f32 %v128, %v534
  %v536 = vpop.f32.mrb[0].mxu0
  %v537 = vadd.f32 %v132, %v536
  %538 = vdwg.mxu0
  %539 = vmatprep.subr.bf16.mxu0 0
  %540 = vmatpush1.bf16.xpose.msra.mxu0 %v379
  %541 = vmatprep.subr.bf16.mxu0 0
  %542 = vmatpush1.bf16.xpose.msra.mxu0 %v382
  %543 = vmatprep.subr.bf16.mxu0 0
  %544 = vmatpush1.bf16.xpose.msra.mxu0 %v385
  %545 = vmatprep.subr.bf16.mxu0 0
  %546 = vmatpush1.bf16.xpose.msra.mxu0 %v388
  %547 = vmatprep.subr.bf16.mxu0 0
  %548 = vmatpush1.bf16.xpose.msra.mxu0 %v391
  %549 = vmatprep.subr.bf16.mxu0 0
  %550 = vmatpush1.bf16.xpose.msra.mxu0 %v394
  %551 = vmatprep.subr.bf16.mxu0 0
  %552 = vmatpush1.bf16.xpose.msra.mxu0 %v397
  %553 = vmatprep.subr.bf16.mxu0 0
  %554 = vmatpush1.bf16.xpose.msra.mxu0 %v400
  %555 = vmatprep.subr.bf16.mxu0 0
  %556 = vmatpush1.bf16.xpose.msra.mxu0 %v403
  %557 = vmatprep.subr.bf16.mxu0 0
  %558 = vmatpush1.bf16.xpose.msra.mxu0 %v406
  %559 = vmatprep.subr.bf16.mxu0 0
  %560 = vmatpush1.bf16.xpose.msra.mxu0 %v409
  %561 = vmatprep.subr.bf16.mxu0 0
  %562 = vmatpush1.bf16.xpose.msra.mxu0 %v412
  %563 = vmatprep.subr.bf16.mxu0 0
  %564 = vmatpush1.bf16.xpose.msra.mxu0 %v415
  %565 = vmatprep.subr.bf16.mxu0 0
  %566 = vmatpush1.bf16.xpose.msra.mxu0 %v418
  %567 = vmatprep.subr.bf16.mxu0 0
  %568 = vmatpush1.bf16.xpose.msra.mxu0 %v421
  %569 = vmatprep.subr.bf16.mxu0 0
  %570 = vmatpush1.bf16.xpose.msra.mxu0 %v424
  %571 = vmatprep.mubr.bf16.mxu0 0
  %572 = vmatmul.mubr.bf16.gmra.mrb[0].mxu0 %v307
  %v573 = vpop.f32.mrb[0].mxu0
  %v574 = vadd.f32 %v136, %v573
  %v575 = vpop.f32.mrb[0].mxu0
  %v576 = vadd.f32 %v140, %v575
  %v577 = vpop.f32.mrb[0].mxu0
  %v578 = vadd.f32 %v136, %v577
  %v579 = vpop.f32.mrb[0].mxu0
  %v580 = vadd.f32 %v140, %v579
  %581 = vmatprep.mubr.bf16.mxu0 0
  %582 = vmatmul.mubr.bf16.gmra.mrb[0].mxu0 %v310
  %v583 = vpop.f32.mrb[0].mxu0
  %v584 = vadd.f32 %v136, %v583
  %v585 = vpop.f32.mrb[0].mxu0
  %v586 = vadd.f32 %v140, %v585
  %v587 = vpop.f32.mrb[0].mxu0
  %v588 = vadd.f32 %v136, %v587
  %v589 = vpop.f32.mrb[0].mxu0
  %v590 = vadd.f32 %v140, %v589
  %591 = vmatprep.mubr.bf16.mxu0 0
  %592 = vmatmul.mubr.bf16.gmra.mrb[0].mxu0 %v313
  %v593 = vpop.f32.mrb[0].mxu0
  %v594 = vadd.f32 %v136, %v593
  %v595 = vpop.f32.mrb[0].mxu0
  %v596 = vadd.f32 %v140, %v595
  %v597 = vpop.f32.mrb[0].mxu0
  %v598 = vadd.f32 %v136, %v597
  %v599 = vpop.f32.mrb[0].mxu0
  %v600 = vadd.f32 %v140, %v599
  %601 = vmatprep.mubr.bf16.mxu0 0
  %602 = vmatmul.mubr.bf16.gmra.mrb[0].mxu0 %v316
  %v603 = vpop.f32.mrb[0].mxu0
  %v604 = vadd.f32 %v136, %v603
  %v605 = vpop.f32.mrb[0].mxu0
  %v606 = vadd.f32 %v140, %v605
  %v607 = vpop.f32.mrb[0].mxu0
  %v608 = vadd.f32 %v136, %v607
  %v609 = vpop.f32.mrb[0].mxu0
  %v610 = vadd.f32 %v140, %v609
  %611 = vmatprep.mubr.bf16.mxu0 0
  %612 = vmatmul.mubr.bf16.gmra.mrb[0].mxu0 %v319
  %v613 = vpop.f32.mrb[0].mxu0
  %v614 = vadd.f32 %v136, %v613
  %v615 = vpop.f32.mrb[0].mxu0
  %v616 = vadd.f32 %v140, %v615
  %v617 = vpop.f32.mrb[0].mxu0
  %v618 = vadd.f32 %v136, %v617
  %v619 = vpop.f32.mrb[0].mxu0
  %v620 = vadd.f32 %v140, %v619
  %621 = vmatprep.mubr.bf16.mxu0 0
  %622 = vmatmul.mubr.bf16.gmra.mrb[0].mxu0 %v322
  %v623 = vpop.f32.mrb[0].mxu0
  %v624 = vadd.f32 %v136, %v623
  %v625 = vpop.f32.mrb[0].mxu0
  %v626 = vadd.f32 %v140, %v625
  %v627 = vpop.f32.mrb[0].mxu0
  %v628 = vadd.f32 %v136, %v627
  %v629 = vpop.f32.mrb[0].mxu0
  %v630 = vadd.f32 %v140, %v629
  %631 = vmatprep.mubr.bf16.mxu0 0
  %632 = vmatmul.mubr.bf16.gmra.mrb[0].mxu0 %v325
  %v633 = vpop.f32.mrb[0].mxu0
  %v634 = vadd.f32 %v136, %v633
  %v635 = vpop.f32.mrb[0].mxu0
  %v636 = vadd.f32 %v140, %v635
  %v637 = vpop.f32.mrb[0].mxu0
  %v638 = vadd.f32 %v136, %v637
  %v639 = vpop.f32.mrb[0].mxu0
  %v640 = vadd.f32 %v140, %v639
  %641 = vmatprep.mubr.bf16.mxu0 0
  %642 = vmatmul.mubr.bf16.gmra.mrb[0].mxu0 %v328
  %v643 = vpop.f32.mrb[0].mxu0
  %v644 = vadd.f32 %v136, %v643
  %v645 = vpop.f32.mrb[0].mxu0
  %v646 = vadd.f32 %v140, %v645
  %v647 = vpop.f32.mrb[0].mxu0
  %v648 = vadd.f32 %v136, %v647
  %v649 = vpop.f32.mrb[0].mxu0
  %v650 = vadd.f32 %v140, %v649
  %651 = vdwg.mxu0
  %v652 = vmax.f32 %v461, 0.0
  %v653 = vmax.f32 %v463, 0.0
  %v654 = vmax.f32 %v574, 0.0
  %v655 = vmax.f32 %v576, 0.0
  %v656 = vmax.f32 %v465, 0.0
  %v657 = vmax.f32 %v467, 0.0
  %v658 = vmax.f32 %v578, 0.0
  %v659 = vmax.f32 %v580, 0.0
  %v660 = vmax.f32 %v471, 0.0
  %v661 = vmax.f32 %v473, 0.0
  %v662 = vmax.f32 %v584, 0.0
  %v663 = vmax.f32 %v586, 0.0
  %v664 = vmax.f32 %v475, 0.0
  %v665 = vmax.f32 %v477, 0.0
  %v666 = vmax.f32 %v588, 0.0
  %v667 = vmax.f32 %v590, 0.0
  %v668 = vmax.f32 %v481, 0.0
  %v669 = vmax.f32 %v483, 0.0
  %v670 = vmax.f32 %v594, 0.0
  %v671 = vmax.f32 %v596, 0.0
  %v672 = vmax.f32 %v485, 0.0
  %v673 = vmax.f32 %v487, 0.0
  %v674 = vmax.f32 %v598, 0.0
  %v675 = vmax.f32 %v600, 0.0
  %v676 = vmax.f32 %v491, 0.0
  %v677 = vmax.f32 %v493, 0.0
  %v678 = vmax.f32 %v604, 0.0
  %v679 = vmax.f32 %v606, 0.0
  %v680 = vmax.f32 %v495, 0.0
  %v681 = vmax.f32 %v497, 0.0
  %v682 = vmax.f32 %v608, 0.0
  %v683 = vmax.f32 %v610, 0.0
  %v684 = vmax.f32 %v501, 0.0
  %v685 = vmax.f32 %v503, 0.0
  %v686 = vmax.f32 %v614, 0.0
  %v687 = vmax.f32 %v616, 0.0
  %v688 = vmax.f32 %v505, 0.0
  %v689 = vmax.f32 %v507, 0.0
  %v690 = vmax.f32 %v618, 0.0
  %v691 = vmax.f32 %v620, 0.0
  %v692 = vmax.f32 %v511, 0.0
  %v693 = vmax.f32 %v513, 0.0
  %v694 = vmax.f32 %v624, 0.0
  %v695 = vmax.f32 %v626, 0.0
  %v696 = vmax.f32 %v515, 0.0
  %v697 = vmax.f32 %v517, 0.0
  %v698 = vmax.f32 %v628, 0.0
  %v699 = vmax.f32 %v630, 0.0
  %v700 = vmax.f32 %v521, 0.0
  %v701 = vmax.f32 %v523, 0.0
  %v702 = vmax.f32 %v634, 0.0
  %v703 = vmax.f32 %v636, 0.0
  %v704 = vmax.f32 %v525, 0.0
  %v705 = vmax.f32 %v527, 0.0
  %v706 = vmax.f32 %v638, 0.0
  %v707 = vmax.f32 %v640, 0.0
  %v708 = vmax.f32 %v531, 0.0
  %v709 = vmax.f32 %v533, 0.0
  %v710 = vmax.f32 %v644, 0.0
  %v711 = vmax.f32 %v646, 0.0
  %v712 = vmax.f32 %v535, 0.0
  %v713 = vmax.f32 %v537, 0.0
  %v714 = vmax.f32 %v648, 0.0
  %v715 = vmax.f32 %v650, 0.0
  %v716 = vpack.c.bf16 %v656, %v652
  %v717 = vpack.c.bf16 %v657, %v653
  %v718 = vpack.c.bf16 %v658, %v654
  %v719 = vpack.c.bf16 %v659, %v655
  %v720 = vpack.c.bf16 %v664, %v660
  %v721 = vpack.c.bf16 %v665, %v661
  %v722 = vpack.c.bf16 %v666, %v662
  %v723 = vpack.c.bf16 %v667, %v663
  %v724 = vpack.c.bf16 %v672, %v668
  %v725 = vpack.c.bf16 %v673, %v669
  %v726 = vpack.c.bf16 %v674, %v670
  %v727 = vpack.c.bf16 %v675, %v671
  %v728 = vpack.c.bf16 %v680, %v676
  %v729 = vpack.c.bf16 %v681, %v677
  %v730 = vpack.c.bf16 %v682, %v678
  %v731 = vpack.c.bf16 %v683, %v679
  %v732 = vpack.c.bf16 %v688, %v684
  %v733 = vpack.c.bf16 %v689, %v685
  %v734 = vpack.c.bf16 %v690, %v686
  %v735 = vpack.c.bf16 %v691, %v687
  %v736 = vpack.c.bf16 %v696, %v692
  %v737 = vpack.c.bf16 %v697, %v693
  %v738 = vpack.c.bf16 %v698, %v694
  %v739 = vpack.c.bf16 %v699, %v695
  %v740 = vpack.c.bf16 %v704, %v700
  %v741 = vpack.c.bf16 %v705, %v701
  %v742 = vpack.c.bf16 %v706, %v702
  %v743 = vpack.c.bf16 %v707, %v703
  %v744 = vpack.c.bf16 %v712, %v708
  %v745 = vpack.c.bf16 %v713, %v709
  %v746 = vpack.c.bf16 %v714, %v710
  %v747 = vpack.c.bf16 %v715, %v711
  %v748 = vld [vmem:[%s3] sm:$0xff]
  %v749 = vld [vmem:[%s3 + $0x8] sm:$0xff]
  %v750 = vld [vmem:[%s3 + $0x10] sm:$0xff]
  %v751 = vld [vmem:[%s3 + $0x18] sm:$0xff]
  %v752 = vld [vmem:[%s3 + $0x20] sm:$0xff]
  %v753 = vld [vmem:[%s3 + $0x28] sm:$0xff]
  %v754 = vld [vmem:[%s3 + $0x30] sm:$0xff]
  %v755 = vld [vmem:[%s3 + $0x38] sm:$0xff]
  %v756 = vld [vmem:[%s3 + $0x40] sm:$0xff]
  %v757 = vld [vmem:[%s3 + $0x48] sm:$0xff]
  %v758 = vld [vmem:[%s3 + $0x50] sm:$0xff]
  %v759 = vld [vmem:[%s3 + $0x58] sm:$0xff]
  %v760 = vld [vmem:[%s3 + $0x60] sm:$0xff]
  %v761 = vld [vmem:[%s3 + $0x68] sm:$0xff]
  %v762 = vld [vmem:[%s3 + $0x70] sm:$0xff]
  %v763 = vld [vmem:[%s3 + $0x78] sm:$0xff]
  %v764 = vld [vmem:[%s3 + $0x80] sm:$0xff]
  %v765 = vld [vmem:[%s3 + $0x88] sm:$0xff]
  %v766 = vld [vmem:[%s3 + $0x90] sm:$0xff]
  %v767 = vld [vmem:[%s3 + $0x98] sm:$0xff]
  %v768 = vld [vmem:[%s3 + $0xa0] sm:$0xff]
  %v769 = vld [vmem:[%s3 + $0xa8] sm:$0xff]
  %v770 = vld [vmem:[%s3 + $0xb0] sm:$0xff]
  %v771 = vld [vmem:[%s3 + $0xb8] sm:$0xff]
  %v772 = vld [vmem:[%s3 + $0xc0] sm:$0xff]
  %v773 = vld [vmem:[%s3 + $0xc8] sm:$0xff]
  %v774 = vld [vmem:[%s3 + $0xd0] sm:$0xff]
  %v775 = vld [vmem:[%s3 + $0xd8] sm:$0xff]
  %v776 = vld [vmem:[%s3 + $0xe0] sm:$0xff]
  %v777 = vld [vmem:[%s3 + $0xe8] sm:$0xff]
  %v778 = vld [vmem:[%s3 + $0xf0] sm:$0xff]
  %v779 = vld [vmem:[%s3 + $0xf8] sm:$0xff]
  %v780 = vld [vmem:[%s4] sm:$0x1]
  %v782 = vlaneseq
  %v783 = vshrl.u32 %v782, 7
  %v784 = vsub.s32 0, %v783
  %v785 = vrot.slane %v780, %v784
  %v819 = vunpack.c.l.b16 %v748
  %v820 = vunpack.c.h.b16 %v748
  %v821 = vunpack.c.l.b16 %v749
  %v822 = vunpack.c.h.b16 %v749
  %v823 = vunpack.c.l.b16 %v750
  %v824 = vunpack.c.h.b16 %v750
  %v825 = vunpack.c.l.b16 %v751
  %v826 = vunpack.c.h.b16 %v751
  %v827 = vunpack.c.l.b16 %v752
  %v828 = vunpack.c.h.b16 %v752
  %v829 = vunpack.c.l.b16 %v753
  %v830 = vunpack.c.h.b16 %v753
  %v831 = vunpack.c.l.b16 %v754
  %v832 = vunpack.c.h.b16 %v754
  %v833 = vunpack.c.l.b16 %v755
  %v834 = vunpack.c.h.b16 %v755
  %v835 = vunpack.c.l.b16 %v756
  %v836 = vunpack.c.h.b16 %v756
  %v837 = vunpack.c.l.b16 %v757
  %v838 = vunpack.c.h.b16 %v757
  %v839 = vunpack.c.l.b16 %v758
  %v840 = vunpack.c.h.b16 %v758
  %v841 = vunpack.c.l.b16 %v759
  %v842 = vunpack.c.h.b16 %v759
  %v843 = vunpack.c.l.b16 %v760
  %v844 = vunpack.c.h.b16 %v760
  %v845 = vunpack.c.l.b16 %v761
  %v846 = vunpack.c.h.b16 %v761
  %v847 = vunpack.c.l.b16 %v762
  %v848 = vunpack.c.h.b16 %v762
  %v849 = vunpack.c.l.b16 %v763
  %v850 = vunpack.c.h.b16 %v763
  %v851 = vunpack.c.l.b16 %v764
  %v852 = vunpack.c.h.b16 %v764
  %v853 = vunpack.c.l.b16 %v765
  %v854 = vunpack.c.h.b16 %v765
  %v855 = vunpack.c.l.b16 %v766
  %v856 = vunpack.c.h.b16 %v766
  %v857 = vunpack.c.l.b16 %v767
  %v858 = vunpack.c.h.b16 %v767
  %v859 = vunpack.c.l.b16 %v768
  %v860 = vunpack.c.h.b16 %v768
  %v861 = vunpack.c.l.b16 %v769
  %v862 = vunpack.c.h.b16 %v769
  %v863 = vunpack.c.l.b16 %v770
  %v864 = vunpack.c.h.b16 %v770
  %v865 = vunpack.c.l.b16 %v771
  %v866 = vunpack.c.h.b16 %v771
  %v867 = vunpack.c.l.b16 %v772
  %v868 = vunpack.c.h.b16 %v772
  %v869 = vunpack.c.l.b16 %v773
  %v870 = vunpack.c.h.b16 %v773
  %v871 = vunpack.c.l.b16 %v774
  %v872 = vunpack.c.h.b16 %v774
  %v873 = vunpack.c.l.b16 %v775
  %v874 = vunpack.c.h.b16 %v775
  %v875 = vunpack.c.l.b16 %v776
  %v876 = vunpack.c.h.b16 %v776
  %v877 = vunpack.c.l.b16 %v777
  %v878 = vunpack.c.h.b16 %v777
  %v879 = vunpack.c.l.b16 %v778
  %v880 = vunpack.c.h.b16 %v778
  %v881 = vunpack.c.l.b16 %v779
  %v882 = vunpack.c.h.b16 %v779
  %v883 = vpack.c.b16 %v823, %v819
  %v884 = vpack.c.b16 %v824, %v820
  %v885 = vpack.c.b16 %v825, %v821
  %v886 = vpack.c.b16 %v826, %v822
  %v887 = vpack.c.b16 %v831, %v827
  %v888 = vpack.c.b16 %v832, %v828
  %v889 = vpack.c.b16 %v833, %v829
  %v890 = vpack.c.b16 %v834, %v830
  %v891 = vpack.c.b16 %v839, %v835
  %v892 = vpack.c.b16 %v840, %v836
  %v893 = vpack.c.b16 %v841, %v837
  %v894 = vpack.c.b16 %v842, %v838
  %v895 = vpack.c.b16 %v847, %v843
  %v896 = vpack.c.b16 %v848, %v844
  %v897 = vpack.c.b16 %v849, %v845
  %v898 = vpack.c.b16 %v850, %v846
  %v899 = vpack.c.b16 %v855, %v851
  %v900 = vpack.c.b16 %v856, %v852
  %v901 = vpack.c.b16 %v857, %v853
  %v902 = vpack.c.b16 %v858, %v854
  %v903 = vpack.c.b16 %v863, %v859
  %v904 = vpack.c.b16 %v864, %v860
  %v905 = vpack.c.b16 %v865, %v861
  %v906 = vpack.c.b16 %v866, %v862
  %v907 = vpack.c.b16 %v871, %v867
  %v908 = vpack.c.b16 %v872, %v868
  %v909 = vpack.c.b16 %v873, %v869
  %v910 = vpack.c.b16 %v874, %v870
  %v911 = vpack.c.b16 %v879, %v875
  %v912 = vpack.c.b16 %v880, %v876
  %v913 = vpack.c.b16 %v881, %v877
  %v914 = vpack.c.b16 %v882, %v878
  %947 = vmatprep.subr.bf16.mxu0 %v884
  %948 = vmatpush1.bf16.xpose.msra.mxu0 %v883
  %949 = vmatprep.subr.bf16.mxu0 %v888
  %950 = vmatpush1.bf16.xpose.msra.mxu0 %v887
  %951 = vmatprep.subr.bf16.mxu0 %v892
  %952 = vmatpush1.bf16.xpose.msra.mxu0 %v891
  %953 = vmatprep.subr.bf16.mxu0 %v896
  %954 = vmatpush1.bf16.xpose.msra.mxu0 %v895
  %955 = vmatprep.subr.bf16.mxu0 %v900
  %956 = vmatpush1.bf16.xpose.msra.mxu0 %v899
  %957 = vmatprep.subr.bf16.mxu0 %v904
  %958 = vmatpush1.bf16.xpose.msra.mxu0 %v903
  %959 = vmatprep.subr.bf16.mxu0 %v908
  %960 = vmatpush1.bf16.xpose.msra.mxu0 %v907
  %961 = vmatprep.subr.bf16.mxu0 %v912
  %962 = vmatpush1.bf16.xpose.msra.mxu0 %v911
  %963 = vmatprep.subr.bf16.mxu0 0
  %964 = vmatpush1.bf16.xpose.msra.mxu0 0
  %965 = vmatprep.subr.bf16.mxu0 0
  %966 = vmatpush1.bf16.xpose.msra.mxu0 0
  %967 = vmatprep.subr.bf16.mxu0 0
  %968 = vmatpush1.bf16.xpose.msra.mxu0 0
  %969 = vmatprep.subr.bf16.mxu0 0
  %970 = vmatpush1.bf16.xpose.msra.mxu0 0
  %971 = vmatprep.subr.bf16.mxu0 0
  %972 = vmatpush1.bf16.xpose.msra.mxu0 0
  %973 = vmatprep.subr.bf16.mxu0 0
  %974 = vmatpush1.bf16.xpose.msra.mxu0 0
  %975 = vmatprep.subr.bf16.mxu0 0
  %976 = vmatpush1.bf16.xpose.msra.mxu0 0
  %977 = vmatprep.subr.bf16.mxu0 0
  %978 = vmatpush1.bf16.xpose.msra.mxu0 0
  %979 = vmatprep.mubr.bf16.mxu0 %v717
  %980 = vmatmul.mubr.bf16.gmra.mrb[0].mxu0 %v716
  %v981 = vpop.f32.mrb[0].mxu0
  %v982 = vadd.f32 %v785, %v981
  %v983 = vpop.f32.mrb[0].mxu0
  %v984 = vpop.f32.mrb[0].mxu0
  %v985 = vadd.f32 %v785, %v984
  %v986 = vpop.f32.mrb[0].mxu0
  %987 = vmatprep.mubr.bf16.mxu0 %v721
  %988 = vmatmul.mubr.bf16.gmra.mrb[0].mxu0 %v720
  %v989 = vpop.f32.mrb[0].mxu0
  %v990 = vadd.f32 %v785, %v989
  %v991 = vpop.f32.mrb[0].mxu0
  %v992 = vpop.f32.mrb[0].mxu0
  %v993 = vadd.f32 %v785, %v992
  %v994 = vpop.f32.mrb[0].mxu0
  %995 = vmatprep.mubr.bf16.mxu0 %v725
  %996 = vmatmul.mubr.bf16.gmra.mrb[0].mxu0 %v724
  %v997 = vpop.f32.mrb[0].mxu0
  %v998 = vadd.f32 %v785, %v997
  %v999 = vpop.f32.mrb[0].mxu0
  %v1000 = vpop.f32.mrb[0].mxu0
  %v1001 = vadd.f32 %v785, %v1000
  %v1002 = vpop.f32.mrb[0].mxu0
  %1003 = vmatprep.mubr.bf16.mxu0 %v729
  %1004 = vmatmul.mubr.bf16.gmra.mrb[0].mxu0 %v728
  %v1005 = vpop.f32.mrb[0].mxu0
  %v1006 = vadd.f32 %v785, %v1005
  %v1007 = vpop.f32.mrb[0].mxu0
  %v1008 = vpop.f32.mrb[0].mxu0
  %v1009 = vadd.f32 %v785, %v1008
  %v1010 = vpop.f32.mrb[0].mxu0
  %1011 = vmatprep.mubr.bf16.mxu0 %v733
  %1012 = vmatmul.mubr.bf16.gmra.mrb[0].mxu0 %v732
  %v1013 = vpop.f32.mrb[0].mxu0
  %v1014 = vadd.f32 %v785, %v1013
  %v1015 = vpop.f32.mrb[0].mxu0
  %v1016 = vpop.f32.mrb[0].mxu0
  %v1017 = vadd.f32 %v785, %v1016
  %v1018 = vpop.f32.mrb[0].mxu0
  %1019 = vmatprep.mubr.bf16.mxu0 %v737
  %1020 = vmatmul.mubr.bf16.gmra.mrb[0].mxu0 %v736
  %v1021 = vpop.f32.mrb[0].mxu0
  %v1022 = vadd.f32 %v785, %v1021
  %v1023 = vpop.f32.mrb[0].mxu0
  %v1024 = vpop.f32.mrb[0].mxu0
  %v1025 = vadd.f32 %v785, %v1024
  %v1026 = vpop.f32.mrb[0].mxu0
  %1027 = vmatprep.mubr.bf16.mxu0 %v741
  %1028 = vmatmul.mubr.bf16.gmra.mrb[0].mxu0 %v740
  %v1029 = vpop.f32.mrb[0].mxu0
  %v1030 = vadd.f32 %v785, %v1029
  %v1031 = vpop.f32.mrb[0].mxu0
  %v1032 = vpop.f32.mrb[0].mxu0
  %v1033 = vadd.f32 %v785, %v1032
  %v1034 = vpop.f32.mrb[0].mxu0
  %1035 = vmatprep.mubr.bf16.mxu0 %v745
  %1036 = vmatmul.mubr.bf16.gmra.mrb[0].mxu0 %v744
  %v1037 = vpop.f32.mrb[0].mxu0
  %v1038 = vadd.f32 %v785, %v1037
  %v1039 = vpop.f32.mrb[0].mxu0
  %v1040 = vpop.f32.mrb[0].mxu0
  %v1041 = vadd.f32 %v785, %v1040
  %v1042 = vpop.f32.mrb[0].mxu0
  %1043 = vdwg.mxu0
  %1044 = vmatprep.subr.bf16.mxu0 %v886
  %1045 = vmatpush1.bf16.xpose.msra.mxu0 %v885
  %1046 = vmatprep.subr.bf16.mxu0 %v890
  %1047 = vmatpush1.bf16.xpose.msra.mxu0 %v889
  %1048 = vmatprep.subr.bf16.mxu0 %v894
  %1049 = vmatpush1.bf16.xpose.msra.mxu0 %v893
  %1050 = vmatprep.subr.bf16.mxu0 %v898
  %1051 = vmatpush1.bf16.xpose.msra.mxu0 %v897
  %1052 = vmatprep.subr.bf16.mxu0 %v902
  %1053 = vmatpush1.bf16.xpose.msra.mxu0 %v901
  %1054 = vmatprep.subr.bf16.mxu0 %v906
  %1055 = vmatpush1.bf16.xpose.msra.mxu0 %v905
  %1056 = vmatprep.subr.bf16.mxu0 %v910
  %1057 = vmatpush1.bf16.xpose.msra.mxu0 %v909
  %1058 = vmatprep.subr.bf16.mxu0 %v914
  %1059 = vmatpush1.bf16.xpose.msra.mxu0 %v913
  %1060 = vmatprep.subr.bf16.mxu0 0
  %1061 = vmatpush1.bf16.xpose.msra.mxu0 0
  %1062 = vmatprep.subr.bf16.mxu0 0
  %1063 = vmatpush1.bf16.xpose.msra.mxu0 0
  %1064 = vmatprep.subr.bf16.mxu0 0
  %1065 = vmatpush1.bf16.xpose.msra.mxu0 0
  %1066 = vmatprep.subr.bf16.mxu0 0
  %1067 = vmatpush1.bf16.xpose.msra.mxu0 0
  %1068 = vmatprep.subr.bf16.mxu0 0
  %1069 = vmatpush1.bf16.xpose.msra.mxu0 0
  %1070 = vmatprep.subr.bf16.mxu0 0
  %1071 = vmatpush1.bf16.xpose.msra.mxu0 0
  %1072 = vmatprep.subr.bf16.mxu0 0
  %1073 = vmatpush1.bf16.xpose.msra.mxu0 0
  %1074 = vmatprep.subr.bf16.mxu0 0
  %1075 = vmatpush1.bf16.xpose.msra.mxu0 0
  %1076 = vmatprep.mubr.bf16.mxu0 %v719
  %1077 = vmatmul.mubr.bf16.gmra.mrb[0].mxu0 %v718
  %v1078 = vpop.f32.mrb[0].mxu0
  %v1079 = vadd.f32 %v982, %v1078
  %v1080 = vpop.f32.mrb[0].mxu0
  %v1081 = vpop.f32.mrb[0].mxu0
  %v1082 = vadd.f32 %v985, %v1081
  %v1083 = vpop.f32.mrb[0].mxu0
  %1084 = vmatprep.mubr.bf16.mxu0 %v723
  %1085 = vmatmul.mubr.bf16.gmra.mrb[0].mxu0 %v722
  %v1086 = vpop.f32.mrb[0].mxu0
  %v1087 = vadd.f32 %v990, %v1086
  %v1088 = vpop.f32.mrb[0].mxu0
  %v1089 = vpop.f32.mrb[0].mxu0
  %v1090 = vadd.f32 %v993, %v1089
  %v1091 = vpop.f32.mrb[0].mxu0
  %1092 = vmatprep.mubr.bf16.mxu0 %v727
  %1093 = vmatmul.mubr.bf16.gmra.mrb[0].mxu0 %v726
  %v1094 = vpop.f32.mrb[0].mxu0
  %v1095 = vadd.f32 %v998, %v1094
  %v1096 = vpop.f32.mrb[0].mxu0
  %v1097 = vpop.f32.mrb[0].mxu0
  %v1098 = vadd.f32 %v1001, %v1097
  %v1099 = vpop.f32.mrb[0].mxu0
  %1100 = vmatprep.mubr.bf16.mxu0 %v731
  %1101 = vmatmul.mubr.bf16.gmra.mrb[0].mxu0 %v730
  %v1102 = vpop.f32.mrb[0].mxu0
  %v1103 = vadd.f32 %v1006, %v1102
  %v1104 = vpop.f32.mrb[0].mxu0
  %v1105 = vpop.f32.mrb[0].mxu0
  %v1106 = vadd.f32 %v1009, %v1105
  %v1107 = vpop.f32.mrb[0].mxu0
  %1108 = vmatprep.mubr.bf16.mxu0 %v735
  %1109 = vmatmul.mubr.bf16.gmra.mrb[0].mxu0 %v734
  %v1110 = vpop.f32.mrb[0].mxu0
  %v1111 = vadd.f32 %v1014, %v1110
  %v1112 = vpop.f32.mrb[0].mxu0
  %v1113 = vpop.f32.mrb[0].mxu0
  %v1114 = vadd.f32 %v1017, %v1113
  %v1115 = vpop.f32.mrb[0].mxu0
  %1116 = vmatprep.mubr.bf16.mxu0 %v739
  %1117 = vmatmul.mubr.bf16.gmra.mrb[0].mxu0 %v738
  %v1118 = vpop.f32.mrb[0].mxu0
  %v1119 = vadd.f32 %v1022, %v1118
  %v1120 = vpop.f32.mrb[0].mxu0
  %v1121 = vpop.f32.mrb[0].mxu0
  %v1122 = vadd.f32 %v1025, %v1121
  %v1123 = vpop.f32.mrb[0].mxu0
  %1124 = vmatprep.mubr.bf16.mxu0 %v743
  %1125 = vmatmul.mubr.bf16.gmra.mrb[0].mxu0 %v742
  %v1126 = vpop.f32.mrb[0].mxu0
  %v1127 = vadd.f32 %v1030, %v1126
  %v1128 = vpop.f32.mrb[0].mxu0
  %v1129 = vpop.f32.mrb[0].mxu0
  %v1130 = vadd.f32 %v1033, %v1129
  %v1131 = vpop.f32.mrb[0].mxu0
  %1132 = vmatprep.mubr.bf16.mxu0 %v747
  %1133 = vmatmul.mubr.bf16.gmra.mrb[0].mxu0 %v746
  %v1134 = vpop.f32.mrb[0].mxu0
  %v1135 = vadd.f32 %v1038, %v1134
  %v1136 = vpop.f32.mrb[0].mxu0
  %v1137 = vpop.f32.mrb[0].mxu0
  %v1138 = vadd.f32 %v1041, %v1137
  %v1139 = vpop.f32.mrb[0].mxu0
  %1140 = vdwg.mxu0
  %v1141 = vmax.f32 %v1079, 0.0
  %v1142 = vmax.f32 %v1082, 0.0
  %v1143 = vmax.f32 %v1087, 0.0
  %v1144 = vmax.f32 %v1090, 0.0
  %v1145 = vmax.f32 %v1095, 0.0
  %v1146 = vmax.f32 %v1098, 0.0
  %v1147 = vmax.f32 %v1103, 0.0
  %v1148 = vmax.f32 %v1106, 0.0
  %v1149 = vmax.f32 %v1111, 0.0
  %v1150 = vmax.f32 %v1114, 0.0
  %v1151 = vmax.f32 %v1119, 0.0
  %v1152 = vmax.f32 %v1122, 0.0
  %v1153 = vmax.f32 %v1127, 0.0
  %v1154 = vmax.f32 %v1130, 0.0
  %v1155 = vmax.f32 %v1135, 0.0
  %v1156 = vmax.f32 %v1138, 0.0
  %v1157 = vpack.c.bf16 %v1142, %v1141
  %v1158 = vpack.c.bf16 %v1144, %v1143
  %v1159 = vpack.c.bf16 %v1146, %v1145
  %v1160 = vpack.c.bf16 %v1148, %v1147
  %v1161 = vpack.c.bf16 %v1150, %v1149
  %v1162 = vpack.c.bf16 %v1152, %v1151
  %v1163 = vpack.c.bf16 %v1154, %v1153
  %v1164 = vpack.c.bf16 %v1156, %v1155
  %v1165 = vld [vmem:[%s5] sm:$0xf]
  %v1166 = vld [vmem:[%s5 + $0x4] sm:$0xf]
  %v1167 = vld [vmem:[%s5 + $0x8] sm:$0xf]
  %v1168 = vld [vmem:[%s5 + $0xc] sm:$0xf]
  %v1169 = vld [vmem:[%s5 + $0x10] sm:$0xf]
  %v1170 = vld [vmem:[%s5 + $0x14] sm:$0xf]
  %v1171 = vld [vmem:[%s5 + $0x18] sm:$0xf]
  %v1172 = vld [vmem:[%s5 + $0x1c] sm:$0xf]
  %v1173 = vld [vmem:[%s6] sm:$0x1]
  %v1175 = vlaneseq
  %v1176 = vshrl.u32 %v1175, 7
  %v1177 = vsub.s32 0, %v1176
  %v1178 = vrot.slane %v1173, %v1177
  %v1188 = vunpack.c.l.b16 %v1165
  %v1189 = vunpack.c.l.b16 %v1166
  %v1190 = vunpack.c.l.b16 %v1167
  %v1191 = vunpack.c.l.b16 %v1168
  %v1192 = vunpack.c.l.b16 %v1169
  %v1193 = vunpack.c.l.b16 %v1170
  %v1194 = vunpack.c.l.b16 %v1171
  %v1195 = vunpack.c.l.b16 %v1172
  %v1196 = vpack.c.b16 %v1189, %v1188
  %v1197 = vpack.c.b16 %v1191, %v1190
  %v1198 = vpack.c.b16 %v1193, %v1192
  %v1199 = vpack.c.b16 %v1195, %v1194
  %1204 = vmatprep.subr.bf16.mxu0 0
  %1205 = vmatpush1.bf16.xpose.msra.mxu0 %v1196
  %1206 = vmatprep.subr.bf16.mxu0 0
  %1207 = vmatpush1.bf16.xpose.msra.mxu0 %v1197
  %1208 = vmatprep.subr.bf16.mxu0 0
  %1209 = vmatpush1.bf16.xpose.msra.mxu0 %v1198
  %1210 = vmatprep.subr.bf16.mxu0 0
  %1211 = vmatpush1.bf16.xpose.msra.mxu0 %v1199
  %1212 = vmatprep.subr.bf16.mxu0 0
  %1213 = vmatpush1.bf16.xpose.msra.mxu0 0
  %1214 = vmatprep.subr.bf16.mxu0 0
  %1215 = vmatpush1.bf16.xpose.msra.mxu0 0
  %1216 = vmatprep.subr.bf16.mxu0 0
  %1217 = vmatpush1.bf16.xpose.msra.mxu0 0
  %1218 = vmatprep.subr.bf16.mxu0 0
  %1219 = vmatpush1.bf16.xpose.msra.mxu0 0
  %1220 = vmatprep.subr.bf16.mxu0 0
  %1221 = vmatpush1.bf16.xpose.msra.mxu0 0
  %1222 = vmatprep.subr.bf16.mxu0 0
  %1223 = vmatpush1.bf16.xpose.msra.mxu0 0
  %1224 = vmatprep.subr.bf16.mxu0 0
  %1225 = vmatpush1.bf16.xpose.msra.mxu0 0
  %1226 = vmatprep.subr.bf16.mxu0 0
  %1227 = vmatpush1.bf16.xpose.msra.mxu0 0
  %1228 = vmatprep.subr.bf16.mxu0 0
  %1229 = vmatpush1.bf16.xpose.msra.mxu0 0
  %1230 = vmatprep.subr.bf16.mxu0 0
  %1231 = vmatpush1.bf16.xpose.msra.mxu0 0
  %1232 = vmatprep.subr.bf16.mxu0 0
  %1233 = vmatpush1.bf16.xpose.msra.mxu0 0
  %1234 = vmatprep.subr.bf16.mxu0 0
  %1235 = vmatpush1.bf16.xpose.msra.mxu0 0
  %1236 = vmatprep.mubr.bf16.mxu0 0
  %1237 = vmatmul.mubr.bf16.gmra.mrb[0].mxu0 %v1157
  %v1238 = vpop.f32.mrb[0].mxu0
  %v1239 = vadd.f32 %v1178, %v1238
  %v1240 = vpop.f32.mrb[0].mxu0
  %v1241 = vpop.f32.mrb[0].mxu0
  %v1242 = vadd.f32 %v1178, %v1241
  %v1243 = vpop.f32.mrb[0].mxu0
  %1244 = vmatprep.mubr.bf16.mxu0 0
  %1245 = vmatmul.mubr.bf16.gmra.mrb[0].mxu0 %v1158
  %v1246 = vpop.f32.mrb[0].mxu0
  %v1247 = vadd.f32 %v1178, %v1246
  %v1248 = vpop.f32.mrb[0].mxu0
  %v1249 = vpop.f32.mrb[0].mxu0
  %v1250 = vadd.f32 %v1178, %v1249
  %v1251 = vpop.f32.mrb[0].mxu0
  %1252 = vmatprep.mubr.bf16.mxu0 0
  %1253 = vmatmul.mubr.bf16.gmra.mrb[0].mxu0 %v1159
  %v1254 = vpop.f32.mrb[0].mxu0
  %v1255 = vadd.f32 %v1178, %v1254
  %v1256 = vpop.f32.mrb[0].mxu0
  %v1257 = vpop.f32.mrb[0].mxu0
  %v1258 = vadd.f32 %v1178, %v1257
  %v1259 = vpop.f32.mrb[0].mxu0
  %1260 = vmatprep.mubr.bf16.mxu0 0
  %1261 = vmatmul.mubr.bf16.gmra.mrb[0].mxu0 %v1160
  %v1262 = vpop.f32.mrb[0].mxu0
  %v1263 = vadd.f32 %v1178, %v1262
  %v1264 = vpop.f32.mrb[0].mxu0
  %v1265 = vpop.f32.mrb[0].mxu0
  %v1266 = vadd.f32 %v1178, %v1265
  %v1267 = vpop.f32.mrb[0].mxu0
  %1268 = vmatprep.mubr.bf16.mxu0 0
  %1269 = vmatmul.mubr.bf16.gmra.mrb[0].mxu0 %v1161
  %v1270 = vpop.f32.mrb[0].mxu0
  %v1271 = vadd.f32 %v1178, %v1270
  %v1272 = vpop.f32.mrb[0].mxu0
  %v1273 = vpop.f32.mrb[0].mxu0
  %v1274 = vadd.f32 %v1178, %v1273
  %v1275 = vpop.f32.mrb[0].mxu0
  %1276 = vmatprep.mubr.bf16.mxu0 0
  %1277 = vmatmul.mubr.bf16.gmra.mrb[0].mxu0 %v1162
  %v1278 = vpop.f32.mrb[0].mxu0
  %v1279 = vadd.f32 %v1178, %v1278
  %v1280 = vpop.f32.mrb[0].mxu0
  %v1281 = vpop.f32.mrb[0].mxu0
  %v1282 = vadd.f32 %v1178, %v1281
  %v1283 = vpop.f32.mrb[0].mxu0
  %1284 = vmatprep.mubr.bf16.mxu0 0
  %1285 = vmatmul.mubr.bf16.gmra.mrb[0].mxu0 %v1163
  %v1286 = vpop.f32.mrb[0].mxu0
  %v1287 = vadd.f32 %v1178, %v1286
  %v1288 = vpop.f32.mrb[0].mxu0
  %v1289 = vpop.f32.mrb[0].mxu0
  %v1290 = vadd.f32 %v1178, %v1289
  %v1291 = vpop.f32.mrb[0].mxu0
  %1292 = vmatprep.mubr.bf16.mxu0 0
  %1293 = vmatmul.mubr.bf16.gmra.mrb[0].mxu0 %v1164
  %v1294 = vpop.f32.mrb[0].mxu0
  %v1295 = vadd.f32 %v1178, %v1294
  %v1296 = vpop.f32.mrb[0].mxu0
  %v1297 = vpop.f32.mrb[0].mxu0
  %v1298 = vadd.f32 %v1178, %v1297
  %v1299 = vpop.f32.mrb[0].mxu0
  %1300 = vdwg.mxu0
  %v1301 = vmax.f32 %v1239, 0.0
  %v1302 = vmax.f32 %v1242, 0.0
  %v1303 = vmax.f32 %v1247, 0.0
  %v1304 = vmax.f32 %v1250, 0.0
  %v1305 = vmax.f32 %v1255, 0.0
  %v1306 = vmax.f32 %v1258, 0.0
  %v1307 = vmax.f32 %v1263, 0.0
  %v1308 = vmax.f32 %v1266, 0.0
  %v1309 = vmax.f32 %v1271, 0.0
  %v1310 = vmax.f32 %v1274, 0.0
  %v1311 = vmax.f32 %v1279, 0.0
  %v1312 = vmax.f32 %v1282, 0.0
  %v1313 = vmax.f32 %v1287, 0.0
  %v1314 = vmax.f32 %v1290, 0.0
  %v1315 = vmax.f32 %v1295, 0.0
  %v1316 = vmax.f32 %v1298, 0.0
  %v1317 = vld [vmem:[%s7] sm:$0x1]
  %v1318 = vld [vmem:[#allocation2] sm:$0x1]
  %1320 = vset.pattern.permute.xlu0 0
  %1321 = vperm.xlu0 %1320, %v1318
  %v1322 = vpop.permute.xlu0 %1321
  %v1324 = vlaneseq
  %v1325 = vshrl.u32 %v1324, 7
  %v1326 = vsub.s32 0, %v1325
  %v1327 = vrot.slane %v1322, %v1326
  %vm1328 = vcmask 523264
  %v1330 = vsel %vm1328, %v1317, 0
  %v1333 = vsel %vm1328, %v1301, 0
  %v1336 = vsel %vm1328, %v1302, 0
  %v1339 = vsel %vm1328, %v1303, 0
  %v1342 = vsel %vm1328, %v1304, 0
  %v1345 = vsel %vm1328, %v1305, 0
  %v1348 = vsel %vm1328, %v1306, 0
  %v1351 = vsel %vm1328, %v1307, 0
  %v1354 = vsel %vm1328, %v1308, 0
  %v1357 = vsel %vm1328, %v1309, 0
  %v1360 = vsel %vm1328, %v1310, 0
  %v1363 = vsel %vm1328, %v1311, 0
  %v1366 = vsel %vm1328, %v1312, 0
  %v1369 = vsel %vm1328, %v1313, 0
  %v1372 = vsel %vm1328, %v1314, 0
  %v1375 = vsel %vm1328, %v1315, 0
  %v1378 = vsel %vm1328, %v1316, 0
  %1380 = vmatprep.subr.mxu0 0.0
  %1381 = vmatpush1.xpose.msra.mxu0 %v1333
  %1382 = vmatprep.subr.mxu0 0.0
  %1383 = vmatpush1.xpose.msra.mxu0 %v1336
  %1384 = vmatprep.subr.mxu0 0.0
  %1385 = vmatpush1.xpose.msra.mxu0 %v1339
  %1386 = vmatprep.subr.mxu0 0.0
  %1387 = vmatpush1.xpose.msra.mxu0 %v1342
  %1388 = vmatprep.subr.mxu0 0.0
  %1389 = vmatpush1.xpose.msra.mxu0 %v1345
  %1390 = vmatprep.subr.mxu0 0.0
  %1391 = vmatpush1.xpose.msra.mxu0 %v1348
  %1392 = vmatprep.subr.mxu0 0.0
  %1393 = vmatpush1.xpose.msra.mxu0 %v1351
  %1394 = vmatprep.subr.mxu0 0.0
  %1395 = vmatpush1.xpose.msra.mxu0 %v1354
  %1396 = vmatprep.subr.mxu0 0.0
  %1397 = vmatpush1.xpose.msra.mxu0 %v1357
  %1398 = vmatprep.subr.mxu0 0.0
  %1399 = vmatpush1.xpose.msra.mxu0 %v1360
  %1400 = vmatprep.subr.mxu0 0.0
  %1401 = vmatpush1.xpose.msra.mxu0 %v1363
  %1402 = vmatprep.subr.mxu0 0.0
  %1403 = vmatpush1.xpose.msra.mxu0 %v1366
  %1404 = vmatprep.subr.mxu0 0.0
  %1405 = vmatpush1.xpose.msra.mxu0 %v1369
  %1406 = vmatprep.subr.mxu0 0.0
  %1407 = vmatpush1.xpose.msra.mxu0 %v1372
  %1408 = vmatprep.subr.mxu0 0.0
  %1409 = vmatpush1.xpose.msra.mxu0 %v1375
  %1410 = vmatprep.subr.mxu0 0.0
  %1411 = vmatpush1.xpose.msra.mxu0 %v1378
  %1412 = vmatprep.subr.mxu0 0.0
  %1413 = vmatpush1.xpose.msra.mxu0 0.0
  %1414 = vmatprep.subr.mxu0 0.0
  %1415 = vmatpush1.xpose.msra.mxu0 0.0
  %1416 = vmatprep.subr.mxu0 0.0
  %1417 = vmatpush1.xpose.msra.mxu0 0.0
  %1418 = vmatprep.subr.mxu0 0.0
  %1419 = vmatpush1.xpose.msra.mxu0 0.0
  %1420 = vmatprep.subr.mxu0 0.0
  %1421 = vmatpush1.xpose.msra.mxu0 0.0
  %1422 = vmatprep.subr.mxu0 0.0
  %1423 = vmatpush1.xpose.msra.mxu0 0.0
  %1424 = vmatprep.subr.mxu0 0.0
  %1425 = vmatpush1.xpose.msra.mxu0 0.0
  %1426 = vmatprep.subr.mxu0 0.0
  %1427 = vmatpush1.xpose.msra.mxu0 0.0
  %1428 = vmatprep.subr.mxu0 0.0
  %1429 = vmatpush1.xpose.msra.mxu0 0.0
  %1430 = vmatprep.subr.mxu0 0.0
  %1431 = vmatpush1.xpose.msra.mxu0 0.0
  %1432 = vmatprep.subr.mxu0 0.0
  %1433 = vmatpush1.xpose.msra.mxu0 0.0
  %1434 = vmatprep.subr.mxu0 0.0
  %1435 = vmatpush1.xpose.msra.mxu0 0.0
  %1436 = vmatprep.subr.mxu0 0.0
  %1437 = vmatpush1.xpose.msra.mxu0 0.0
  %1438 = vmatprep.subr.mxu0 0.0
  %1439 = vmatpush1.xpose.msra.mxu0 0.0
  %1440 = vmatprep.subr.mxu0 0.0
  %1441 = vmatpush1.xpose.msra.mxu0 0.0
  %1442 = vmatprep.subr.mxu0 0.0
  %1443 = vmatpush1.xpose.msra.mxu0 0.0
  %1444 = vmatprep.mubr.f32.mxu0 0.0
  %1445 = vmatmul.mubr.f32.gmra.mrb[0].mxu0 %v1330
  %v1446 = vpop.f32.mrb[0].mxu0
  %v1447 = vadd.f32 %v1327, %v1446
  %v1448 = vpop.f32.mrb[0].mxu0
  %1449 = vdwg.mxu0
  %1450 = vst [vmem:[%s9] sm:$0x1] %v1447
  // Predicated region
  $region38: #{mlp_forward.1} parent=0 // pred_check
    _
  $region39: #{mlp_forward.1} parent=0 // pred_check_branch
    %1452 = sbr.rel (0) target = $region41
  $region40: #{mlp_forward.1} parent=0 // pred_region
    _
  $region41: #{mlp_forward.1} parent=0 // pred_fallthru
    _
  // Predicated region
  $region42: #{mlp_forward.1} parent=0 // pred_check
    _
  $region43: #{mlp_forward.1} parent=0 // pred_check_branch
    %1454 = sbr.rel (0) target = $region45
  $region44: #{mlp_forward.1} parent=0 // pred_region
    _
  $region45: #{mlp_forward.1} parent=0 // pred_fallthru
    _

</llo_original>
